<compile_context>
chip_gen: v6e
topology: v6e:2x2x1
jax: 0.10.0
libtpu: 0.0.40
codegen_flags: <defaults>
</compile_context>

<pallas_src>
from functools import partial

import numpy as np
import jax
import jax.numpy as jnp
from jax.experimental import pallas as pl
from jax.experimental.pallas import tpu as pltpu


# Double-buffered pipeline-window budget (input block + output block).  A
# (tile_t, L) block with L <= 128 occupies 128*itemsize bytes per timestep in
# VMEM (lane padding) and the (tile_t, 1) int32 output another 128*4 bytes.
_PIPELINE_VMEM_BUDGET = 20 * 1024 * 1024
_VMEM_LIMIT_BYTES = 32 * 1024 * 1024   # explicit: v5e default is only 16 MiB
# Force >= 2 time tiles above this many timesteps so the "parallel" grid axis
# can feed both of v7x's TensorCores even when one tile would fit in VMEM.
_SPLIT_ROWS = 4096


def _ctc_argmax_kernel(em_ref, idx_ref):
    """Per-timestep argmax over the label (lane) axis.

    em_ref:  (tile_t, L) emission block in its native dtype — DMA'd straight
             from the (T, L) logits (no wrapper pad / transpose / upcast).
    idx_ref: (tile_t, 1) int32 argmax label per timestep.
    """
    e = em_ref[...].astype(jnp.float32)   # compare in f32 (exact for f32 input)
    tt, nl = e.shape

    # torch.argmax treats NaN as the maximum; map NaN -> +inf so a NaN row
    # still yields an in-range (first-NaN) index.  Documented deviation: a
    # real +inf at a lower label index than a NaN wins the tie here.
    key = jnp.where(jnp.isnan(e), jnp.float32(jnp.inf), e)

    maxv = jnp.max(key, axis=-1, keepdims=True)                       # (tt, 1)
    lbl = jax.lax.broadcasted_iota(jnp.int32, (tt, nl), dimension=1)  # (tt, nl)
    # First-occurrence argmax (matches jnp.argmax / CPU torch tie-breaking).
    masked = jnp.where(key == maxv, lbl, jnp.int32(nl))
    idx_ref[...] = jnp.min(masked, axis=-1, keepdims=True)            # (tt, 1)


def _choose_time_tiling(t: int, l: int, itemsize: int):
    """Static (trace-time) tiling: returns (tile_t, n_tiles, t_pad)."""
    lanes = ((max(l, 1) + 127) // 128) * 128
    per_row = 2 * (lanes * itemsize) + 2 * (128 * 4)   # dbl-buffered in + out
    cap = max(64, (_PIPELINE_VMEM_BUDGET // per_row) // 8 * 8)

    n_tiles = -(-t // cap)
    if t >= _SPLIT_ROWS:
        n_tiles = max(n_tiles, 2)          # keep both v7x TensorCores busy
    if n_tiles <= 1:
        return t, 1, t                     # single full-array block, no pad

    tile_t = (-(-t // n_tiles) + 7) // 8 * 8   # balanced, multiple of 8
    n_tiles = -(-t // tile_t)
    return tile_t, n_tiles, n_tiles * tile_t


@partial(jax.jit, static_argnames=("blank",))
def greedy_ctc_indices(emission: jax.Array, *, blank: int = 0):
    """Per-timestep argmax over labels (Pallas TPU kernel) + keep mask.

    Returns (idx, keep): idx[t] = argmax_l emission[t, l] (int32) and
    keep[t] = (idx[t] != idx[t-1]) & (idx[t] != blank).
    """
    t, l = emission.shape
    itemsize = jnp.dtype(emission.dtype).itemsize
    tile_t, n_tiles, t_pad = _choose_time_tiling(t, l, itemsize)

    em = emission
    if t_pad != t:
        # Only reachable on the multi-tile (long T) path when T is not a
        # multiple of the tile; the common single-tile path is copy-free.
        # TODO(synk): a cdiv grid + in-kernel tail masking would drop this copy.
        em = jnp.pad(em, ((0, t_pad - t), (0, 0)))

    out = pl.pallas_call(
        _ctc_argmax_kernel,
        out_shape=jax.ShapeDtypeStruct((t_pad, 1), jnp.int32),
        grid=(n_tiles,),
        in_specs=[pl.BlockSpec((tile_t, l), lambda i: (i, 0))],
        out_specs=pl.BlockSpec((tile_t, 1), lambda i: (i, 0)),
        compiler_params=pltpu.CompilerParams(
            dimension_semantics=("parallel",),
            vmem_limit_bytes=_VMEM_LIMIT_BYTES,
        ),
    )(em)

    idx = out[:t, 0]
    # On-device unique_consecutive + blank prework; the host then does a single
    # vectorized gather + join instead of a per-element Python loop.
    prev = jnp.concatenate([jnp.full((1,), -1, jnp.int32), idx[:-1]])
    keep = (idx != prev) & (idx != jnp.int32(blank))
    return idx, keep


class GreedyCTCDecoder:
    """JAX/Pallas port of the PyTorch GreedyCTCDecoder module."""

    def __init__(self, labels, blank: int = 0):
        self.labels = labels
        self.blank = blank

    def __call__(self, emission: jax.Array) -> str:
        idx, keep = greedy_ctc_indices(emission, blank=self.blank)
        idx = np.asarray(idx)     # single device->host transfer
        keep = np.asarray(keep)
        # TODO(synk): the variable-length collapse result + string join has no
        # Pallas equivalent (Python str output); it runs as a host-side
        # numpy gather + join.
        return ''.join(self.labels[int(i)] for i in idx[keep])


def _reference_transcript(emission, labels, blank=0):
    """The 'PyTorch way' reference decode, on host."""
    ref_idx = np.asarray(jnp.argmax(emission, axis=-1)).tolist()
    collapsed = []
    for i in ref_idx:
        if not collapsed or collapsed[-1] != i:
            collapsed.append(i)
    return ''.join(labels[i] for i in collapsed if i != blank)


if __name__ == "__main__":
    # Deterministic synthetic setup: 32 labels (blank '-' at index 0), 16 steps.
    labels = ["-"] + [chr(ord("a") + i) for i in range(26)] + [" ", "'", ".", ",", "?"]
    assert len(labels) == 32

    key = jax.random.PRNGKey(0)
    num_seq, num_label = 16, 32
    emission = jax.random.normal(key, (num_seq, num_label), dtype=jnp.float32)

    decoder = GreedyCTCDecoder(labels, blank=0)

    # --- Primary check: demo-sized emission (single-tile, copy-free path). ---
    idx, keep = greedy_ctc_indices(emission, blank=0)
    jax.block_until_ready(idx)
    jax.block_until_ready(keep)

    ref_idx = jnp.argmax(emission, axis=-1).astype(jnp.int32)
    assert bool(jnp.all(idx == ref_idx)), "Pallas argmax mismatch vs jnp.argmax"
    assert bool(jnp.all(idx < num_label)) and bool(jnp.all(idx >= 0)), "idx out of range"
    ref_prev = jnp.concatenate([jnp.full((1,), -1, jnp.int32), ref_idx[:-1]])
    ref_keep = (ref_idx != ref_prev) & (ref_idx != 0)
    assert bool(jnp.all(keep == ref_keep)), "keep-mask mismatch vs reference"

    transcript = decoder(emission)
    assert isinstance(transcript, str)
    assert transcript == _reference_transcript(emission, labels, blank=0), \
        "transcript mismatch vs reference decode"

    # --- Secondary check: exercise the multi-tile (parallel grid + ragged
    #     tail pad) path with a still-small emission. ---
    em2 = jax.random.normal(jax.random.PRNGKey(1), (4100, num_label),
                            dtype=jnp.float32)
    idx2, keep2 = greedy_ctc_indices(em2, blank=0)
    jax.block_until_ready(idx2)
    ref_idx2 = jnp.argmax(em2, axis=-1).astype(jnp.int32)
    assert bool(jnp.all(idx2 == ref_idx2)), "multi-tile argmax mismatch"
    ref_prev2 = jnp.concatenate([jnp.full((1,), -1, jnp.int32), ref_idx2[:-1]])
    ref_keep2 = (ref_idx2 != ref_prev2) & (ref_idx2 != 0)
    assert bool(jnp.all(keep2 == ref_keep2)), "multi-tile keep-mask mismatch"

    print("KERNEL_OK")
</pallas_src>

<mosaic_0001>
module attributes {stable_mosaic.version = 11 : i64} {
  func.func @_ctc_argmax_kernel(%arg0: i32, %arg1: memref<16x32xf32, #tpu.memory_space<vmem>>, %arg2: memref<16x1xi32, #tpu.memory_space<vmem>>) attributes {dimension_semantics = [#tpu.dimension_semantics<parallel>], iteration_bounds = array<i64: 1>, scalar_prefetch = 0 : i64, scratch_operands = 0 : i64, tpu.core_type = #tpu.core_type<tc>, window_params = [{transform_indices = @transform_0, window_bounds = array<i64: 16, 32>}, {transform_indices = @transform_1, window_bounds = array<i64: 16, 1>}]} {
    %c0 = arith.constant 0 : index
    %c0_0 = arith.constant 0 : index
    %0 = vector.load %arg1[%c0, %c0_0] : memref<16x32xf32, #tpu.memory_space<vmem>>, vector<16x32xf32>
    %1 = arith.cmpf one, %0, %0 : vector<16x32xf32>
    %cst = arith.constant 0x7F800000 : f32
    %2 = vector.broadcast %cst : f32 to vector<16x32xf32>
    %3 = arith.select %1, %2, %0 : vector<16x32xi1>, vector<16x32xf32>
    %cst_1 = arith.constant dense<0xFF800000> : vector<16xf32>
    %4 = vector.multi_reduction <maximumf>, %3, %cst_1 [1] : vector<16x32xf32> to vector<16xf32>
    %5 = vector.shape_cast %4 : vector<16xf32> to vector<16x1xf32>
    %6 = tpu.iota {dimensions = array<i32: 1>} : vector<16x32xi32>
    %7 = vector.broadcast %5 : vector<16x1xf32> to vector<16x32xf32>
    %8 = arith.cmpf oeq, %3, %7 : vector<16x32xf32>
    %c32_i32 = arith.constant 32 : i32
    %9 = vector.broadcast %c32_i32 : i32 to vector<16x32xi32>
    %10 = arith.select %8, %6, %9 : vector<16x32xi1>, vector<16x32xi32>
    %cst_2 = arith.constant dense<2147483647> : vector<16xi32>
    %11 = vector.multi_reduction <minsi>, %10, %cst_2 [1] : vector<16x32xi32> to vector<16xi32>
    %12 = vector.shape_cast %11 : vector<16xi32> to vector<16x1xi32>
    %c0_3 = arith.constant 0 : index
    %c0_4 = arith.constant 0 : index
    %13 = vector.load %arg2[%c0_3, %c0_4] : memref<16x1xi32, #tpu.memory_space<vmem>>, vector<16x1xi32>
    tpu.vector_store %arg2[%c0_3, %c0_4], %12 {strides = array<i32>} : memref<16x1xi32, #tpu.memory_space<vmem>>, vector<16x1xi32>,
    return
  }
  func.func @transform_0(%arg0: i32) -> (i32, i32) {
    %c0_i32 = arith.constant 0 : i32
    %c0_i32_0 = arith.constant 0 : i32
    return %arg0, %c0_i32 : i32, i32
  }
  func.func @transform_1(%arg0: i32) -> (i32, i32) {
    %c0_i32 = arith.constant 0 : i32
    %c0_i32_0 = arith.constant 0 : i32
    return %arg0, %c0_i32 : i32, i32
  }
}

</mosaic_0001>

<llo_original>
// kernel: greedy_ctc_indices.1
$region0: #{greedy_ctc_indices.1}
  #allocation0 [shape = 'u32[]', space=smem, size = 0x4, offset = 0x4, fixed_abs, tag = 'smem constant byte address 0x4 - core index']
  #allocation1 [shape = 'u32[144,128]{1,0:T(1,128)}', space=vmem, size = 0x12000, scoped, tag = 'internal scratch']
  %s0 = inlined_call_operand.hbm [shape: f32[16,32], index: 0, kind: input, shape index: {}]
  %s1 = inlined_call_operand.vmem [shape: s32[16,1], index: 1, kind: output, shape index: {}]
  %s2 = sld [smem:[#allocation0]]
  $region18: #{greedy_ctc_indices.1} parent=0
    _
  %s4 = ssub.s32 1, %s2
  %s5 = scalar_select 0, %s4, %s2
  $region1: #{greedy_ctc_indices.1} parent=0
    #allocation2 [shape = 'u8[8192]{0}', space=vmem, size = 0x2000, scoped, tag = 'input window, operand 0, single buffered']
    #allocation3 [shape = 's32[1]{0}', space=sflag, size = 0x4, scoped, tag = 'scoped memory for greedy_ctc_indices.1']
    %6 = vsyncpa [#allocation3], 0
    // Predicated region
    $region2: #{greedy_ctc_indices.1} parent=1 // pred_check
      _
    $region3: #{greedy_ctc_indices.1} parent=1 // pred_check_branch
      %8 = sbr.rel (0) target = $region5
    $region4: #{greedy_ctc_indices.1} parent=1 // pred_region
      %s10 = ssub.s32 256, 256
      %11 = vsyncadd [#allocation3], %s10
      %s12 = sshll.u32 [#allocation2], 4
      %s13 = int_to_ptr.vmem [resolvable:$true] %s12
      %18 = dma.hbm_to_vmem [thread:$0]  %s0, 256, %s13, [#allocation3], 128, 128, 8
    $region5: #{greedy_ctc_indices.1} parent=1 // pred_fallthru
      _
    // Predicated region
    $region6: #{greedy_ctc_indices.1} parent=1 // pred_check
      _
    $region7: #{greedy_ctc_indices.1} parent=1 // pred_check_branch
      %20 = sbr.rel (0) target = $region9
    $region8: #{greedy_ctc_indices.1} parent=1 // pred_region
      %21 = dma.done [#allocation3], 256
    $region9: #{greedy_ctc_indices.1} parent=1 // pred_fallthru
      _
    %v22 = vld [vmem:[#allocation2] sm:$0xff]
    %v23 = vld [vmem:[#allocation2 + $0x8] sm:$0xff]
    %vm24 = vcmp.ne.f32.partialorder %v22, %v22
    %vm25 = vcmp.ne.f32.partialorder %v23, %v23
    %v26 = vsel %vm24, inf, %v22
    %v27 = vsel %vm25, inf, %v23
    %vm28 = vcmask 261120
    %v29 = vsel %vm28, %v26, -inf
    %30 = vmax.xlane.f32.xlu0 %v29
    %v31 = vpop.xlane.xlu0 %30
    %v32 = vsel %vm28, %v27, -inf
    %33 = vmax.xlane.f32.xlu0 %v32
    %v34 = vpop.xlane.xlu0 %33
    %v35 = vlaneseq
    %v36 = vand.u32 %v35, 127
    %vm37 = vcmp.eq.f32.partialorder %v26, %v31
    %vm38 = vcmp.eq.f32.partialorder %v27, %v34
    %v39 = vsel %vm37, %v36, 32
    %v40 = vsel %vm38, %v36, 32
    %v41 = vsel %vm28, %v39, 2147483647
    %v42 = vand.u32 %v41, 65535
    %v43 = vshra.s32 %v41, 16
    %v44 = vcvt.s32.f32 %v42
    %v45 = vcvt.s32.f32 %v43
    %46 = vmin.xlane.f32.xlu0 %v45
    %v47 = vpop.xlane.xlu0 %46
    %vm48 = vcmp.eq.f32.partialorder %v45, %v47
    %v49 = vsel %vm48, %v44, inf
    %50 = vmin.xlane.f32.xlu0 %v49
    %v51 = vpop.xlane.xlu0 %50
    %v52 = vcvt.f32.s32 %v51
    %v53 = vcvt.f32.s32 %v47
    %v54 = vshll.u32 %v53, 16
    %v55 = vadd.s32 %v54, %v52
    %v56 = vsel %vm28, %v40, 2147483647
    %v57 = vand.u32 %v56, 65535
    %v58 = vshra.s32 %v56, 16
    %v59 = vcvt.s32.f32 %v57
    %v60 = vcvt.s32.f32 %v58
    %61 = vmin.xlane.f32.xlu0 %v60
    %v62 = vpop.xlane.xlu0 %61
    %vm63 = vcmp.eq.f32.partialorder %v60, %v62
    %v64 = vsel %vm63, %v59, inf
    %65 = vmin.xlane.f32.xlu0 %v64
    %v66 = vpop.xlane.xlu0 %65
    %v67 = vcvt.f32.s32 %v66
    %v68 = vcvt.f32.s32 %v62
    %v69 = vshll.u32 %v68, 16
    %v70 = vadd.s32 %v69, %v67
    %vm71 = vcmask 7168
    %72 = vst.msk [vmem:[%s1] sm:$0xff] %vm71, %v55
    %73 = vst.msk [vmem:[%s1 + $0x8] sm:$0xff] %vm71, %v70
    // Predicated region
    $region10: #{greedy_ctc_indices.1} parent=1 // pred_check
      _
    $region11: #{greedy_ctc_indices.1} parent=1 // pred_check_branch
      %75 = sbr.rel (0) target = $region13
    $region12: #{greedy_ctc_indices.1} parent=1 // pred_region
      _
    $region13: #{greedy_ctc_indices.1} parent=1 // pred_fallthru
      _
    // Predicated region
    $region14: #{greedy_ctc_indices.1} parent=1 // pred_check
      _
    $region15: #{greedy_ctc_indices.1} parent=1 // pred_check_branch
      %77 = sbr.rel (0) target = $region17
    $region16: #{greedy_ctc_indices.1} parent=1 // pred_region
      _
    $region17: #{greedy_ctc_indices.1} parent=1 // pred_fallthru
      _
    %78 = vsyncpa [#allocation3], 1

</llo_original>
